<compile_context>
chip_gen: v7x
topology: tpu7x:2x2x1
jax: 0.10.0
libtpu: 0.0.40
codegen_flags: <defaults>
</compile_context>

<pallas_src>
import functools

import jax
import jax.numpy as jnp
from jax.experimental import pallas as pl
from jax.experimental.pallas import tpu as pltpu


# ----------------------------------------------------------------------------
# Kernel
# ----------------------------------------------------------------------------
def _spatial_projection_kernel(x_ref, w1_ref, b1_ref, posx_ref, posy_ref,
                               w2_ref, b2_ref, out_ref, *, skip_conv, num_kp):
    # x_ref:    (Bt, C, HW)   batch block, HW lane-dense, native dtype
    # w1_ref:   (K, C)        1x1-conv weight (PyTorch layout), K padded to 8
    # b1_ref:   (K, 1)        conv bias (padded rows are zero)
    # posx_ref: (1, HW)
    # posy_ref: (1, HW)
    # w2_ref:   (2K, out_dim) projection weight, pre-transposed, padded rows zero
    # b2_ref:   (1, out_dim)
    # out_ref:  (1, Bt, out_dim)
    Bt, C, HW = x_ref.shape
    K = num_kp

    # --- 1x1 conv -> h: (Bt, K, HW) ---
    if skip_conv:
        # PyTorch skips the conv when num_kp == in_c; do not burn VALU ops
        # multiplying by an identity matrix.
        h = x_ref[...].astype(jnp.float32)
    elif C * K <= 64:
        # Tiny contraction: unrolled VPU FMAs.  Slice the ref per channel so we
        # never hold the whole (Bt, C, HW) slab live alongside h.
        w1 = w1_ref[...]
        h = w1[:, 0:1][None] * x_ref[:, 0:1, :].astype(jnp.float32)
        for c in range(1, C):
            h = h + w1[:, c:c + 1][None] * x_ref[:, c:c + 1, :].astype(jnp.float32)
        h = h + b1_ref[...][None]
    else:
        # Moderate/large C*K: contraction on the MXU.  Batched matmul with the
        # batch on Bt and output lane axis = HW -> no transposes.
        x = x_ref[...].astype(jnp.float32)                       # (Bt, C, HW)
        w1b = jnp.broadcast_to(w1_ref[...][None], (Bt, K, C))    # tiny
        h = jax.lax.dot_general(
            w1b, x,
            dimension_numbers=(((2,), (1,)), ((0,), (0,))),
            preferred_element_type=jnp.float32) + b1_ref[...][None]

    # --- spatial softmax statistics over the HW (lane) axis ---
    m = jnp.max(h, axis=-1, keepdims=True)                       # (Bt, K, 1)
    e = jnp.exp(h - m)                                           # (Bt, K, HW)
    denom = jnp.sum(e, axis=-1)                                  # (Bt, K)

    # --- expected keypoint coordinates: VPU mul + lane reduce ---
    # TODO(synk): if VALU/XLU ever binds here (large K*HW with bf16 inputs),
    # fold sum(e), sum(e*px), sum(e*py) into one MXU matmul against a
    # precomputed (HW, pad) matrix [1 | pos_x | pos_y].
    px = posx_ref[...][None]                                     # (1, 1, HW)
    py = posy_ref[...][None]
    kpx = jnp.sum(e * px, axis=-1) / denom                       # (Bt, K), exact
    kpy = jnp.sum(e * py, axis=-1) / denom

    # --- final linear projection; concat folded into two partial matmuls ---
    w2 = w2_ref[...]                                             # (2K, out_dim)
    out = (jnp.dot(kpx, w2[:K], preferred_element_type=jnp.float32)
           + jnp.dot(kpy, w2[K:], preferred_element_type=jnp.float32)
           + b2_ref[...])                                        # (Bt, out_dim)
    out_ref[0] = out.astype(out_ref.dtype)


# ----------------------------------------------------------------------------
# Wrapper helpers
# ----------------------------------------------------------------------------
def _round_up(x, m):
    return ((x + m - 1) // m) * m


def _vmem_capacity_bytes():
    try:
        return int(pltpu.get_tpu_info().vmem_capacity_bytes)
    except Exception:
        return 64 << 20  # conservative (v7x per-TC VMEM)


def _pick_batch_block(B, C_pad, K_pad, HW, x_bytes, vmem_budget):
    """Pick (Bt, padded_B, per_step_bytes).

    Per-batch-element working set (bytes):
      * double-buffered input DMA tile : 2 * C_pad * HW * x_bytes
      * f32 conv output / cast (h)     :     C_pad * HW * 4
      * softmax exp + e*pos temporaries: 3 * K_pad * HW * 4
    """
    per_b = 2 * C_pad * HW * x_bytes + C_pad * HW * 4 + 3 * K_pad * HW * 4
    cap = max(1, vmem_budget // per_b)
    cap = min(cap, B, 256)
    if B >= 2:
        # Keep at least 2 grid steps so both megacore TensorCores get work.
        cap = min(cap, max(1, B // 2))

    # Prefer exact divisors of B (no padding); among those prefer an even grid
    # count (megacore balance), then the largest block.
    best = None
    for bt in range(cap, 0, -1):
        if B % bt:
            continue
        g = B // bt
        key = ((g % 2) == 0, bt)
        if best is None or key > best[1]:
            best = (bt, key)
    bt = best[0]

    # Awkward B (prime etc.): divisor route collapses to a tiny Bt.  Pad a tail
    # block instead of paying B tiny grid steps (each ~0.35 us overhead).
    if bt * 4 < cap:
        g = -(-B // cap)
        bt = -(-B // g)
        return bt, g * bt, per_b * bt
    return bt, B, per_b * bt


# ----------------------------------------------------------------------------
# Parameters (mirrors the PyTorch module's init + buffers)
# ----------------------------------------------------------------------------
def init_params(key, in_c, in_h, in_w, out_dim):
    num_kp = out_dim // 2
    k1, k2, k3, k4 = jax.random.split(key, 4)
    if num_kp != in_c:
        w_conv = jax.random.normal(k1, (num_kp, in_c), jnp.float32) * 0.1
        b_conv = jax.random.normal(k2, (num_kp,), jnp.float32) * 0.1
    else:
        # PyTorch skips the conv entirely when num_kp == in_c.
        w_conv = jnp.eye(in_c, dtype=jnp.float32)
        b_conv = jnp.zeros((in_c,), jnp.float32)
    w_lin = jax.random.normal(k3, (out_dim, 2 * num_kp), jnp.float32) * 0.1
    b_lin = jax.random.normal(k4, (out_dim,), jnp.float32) * 0.1

    # Exact reproduction of the PyTorch buffers:
    # torch.meshgrid(linspace(-1,1,w), linspace(-1,1,h)) [indexing='ij'],
    # then reshape(1, w*h).  (Deliberately preserves the original module's
    # w-major ordering quirk against the row-major flattened feature map.)
    lin_w = jnp.linspace(-1.0, 1.0, in_w, dtype=jnp.float32)
    lin_h = jnp.linspace(-1.0, 1.0, in_h, dtype=jnp.float32)
    pos_x = jnp.repeat(lin_w, in_h)[None, :]                     # (1, in_w*in_h)
    pos_y = jnp.tile(lin_h, in_w)[None, :]                       # (1, in_w*in_h)
    return dict(w_conv=w_conv, b_conv=b_conv, w_lin=w_lin, b_lin=b_lin,
                pos_x=pos_x, pos_y=pos_y, num_kp=num_kp)


# ----------------------------------------------------------------------------
# Pallas-backed forward
# ----------------------------------------------------------------------------
def spatial_projection_pallas(x_nchw, p):
    B, C, H, W = x_nchw.shape
    HW = H * W
    K = int(p["num_kp"])
    out_dim = int(p["w_lin"].shape[0])
    skip_conv = (K == C)

    x_bytes = jnp.dtype(x_nchw.dtype).itemsize
    Cp = _round_up(C, 8)
    Kp = K if skip_conv else _round_up(K, 8)     # pad K only when conv runs

    vmem_cap = _vmem_capacity_bytes()
    budget = min(vmem_cap * 3 // 8, 48 << 20)    # ~24 MiB on v7x, ~48 MiB else
    Bt, B_pad, step_bytes = _pick_batch_block(B, Cp, Kp, HW, x_bytes, budget)
    G = B_pad // Bt

    # Pure reshape, native dtype -- no upcast, no transpose, no extra HBM pass.
    x = x_nchw.reshape(B, C, HW)
    if B_pad != B:
        x = jnp.pad(x, ((0, B_pad - B), (0, 0), (0, 0)))

    # Weight prep (one-time): pad num_kp rows with zeros so padded keypoints
    # contribute nothing to the output.
    w1 = p["w_conv"].astype(jnp.float32)                          # (K, C)
    b1 = p["b_conv"].astype(jnp.float32)[:, None]                 # (K, 1)
    w2 = p["w_lin"].astype(jnp.float32).T                         # (2K, out_dim)
    if Kp != K:
        w1 = jnp.zeros((Kp, C), jnp.float32).at[:K].set(w1)
        b1 = jnp.zeros((Kp, 1), jnp.float32).at[:K].set(b1)
        w2 = jnp.concatenate(
            [jnp.zeros((Kp, out_dim), jnp.float32).at[:K].set(w2[:K]),
             jnp.zeros((Kp, out_dim), jnp.float32).at[:K].set(w2[K:])], axis=0)
    b2 = p["b_lin"].astype(jnp.float32)[None, :]                  # (1, out_dim)

    kernel = functools.partial(_spatial_projection_kernel,
                               skip_conv=skip_conv, num_kp=Kp)

    conv_flops = 0 if skip_conv else 2 * B_pad * C * Kp * HW
    cost = pl.CostEstimate(
        flops=int(conv_flops + 6 * B_pad * Kp * HW + 4 * B_pad * Kp * out_dim),
        transcendentals=int(B_pad * Kp * HW),
        bytes_accessed=int(B_pad * C * HW * x_bytes + B_pad * out_dim * 4
                           + (Kp * C + Kp + 2 * Kp * out_dim + out_dim
                              + 2 * HW) * 4))

    # Raise the scoped VMEM limit when needed (v5e default is 16 MiB); never
    # lower it below 32 MiB, never ask for more than ~3/4 of physical VMEM.
    vmem_limit = int(min(vmem_cap * 3 // 4,
                         max(32 << 20, step_bytes + (16 << 20))))

    out3 = pl.pallas_call(
        kernel,
        out_shape=jax.ShapeDtypeStruct((G, Bt, out_dim), jnp.float32),
        grid_spec=pltpu.PrefetchScalarGridSpec(
            num_scalar_prefetch=0,
            grid=(G,),
            in_specs=[
                pl.BlockSpec((Bt, C, HW), lambda b: (b, 0, 0)),
                pl.BlockSpec((Kp, C), lambda b: (0, 0)),
                pl.BlockSpec((Kp, 1), lambda b: (0, 0)),
                pl.BlockSpec((1, HW), lambda b: (0, 0)),
                pl.BlockSpec((1, HW), lambda b: (0, 0)),
                pl.BlockSpec((2 * Kp, out_dim), lambda b: (0, 0)),
                pl.BlockSpec((1, out_dim), lambda b: (0, 0)),
            ],
            out_specs=pl.BlockSpec((1, Bt, out_dim), lambda b: (b, 0, 0)),
        ),
        compiler_params=pltpu.CompilerParams(
            dimension_semantics=("parallel",),
            vmem_limit_bytes=vmem_limit),
        cost_estimate=cost,
    )(x, w1, b1, p["pos_x"], p["pos_y"], w2, b2)

    return out3.reshape(B_pad, out_dim)[:B]


# ----------------------------------------------------------------------------
# Pure-JAX reference (mirror of the PyTorch forward), for verification
# ----------------------------------------------------------------------------
def spatial_projection_ref(x_nchw, p):
    B, C, H, W = x_nchw.shape
    K = int(p["num_kp"])
    h = x_nchw
    if K != C:
        h = jnp.einsum("kc,bchw->bkhw", p["w_conv"], x_nchw) \
            + p["b_conv"][None, :, None, None]
    h = h.reshape(-1, H * W)
    att = jax.nn.softmax(h, axis=-1)
    kpx = (p["pos_x"] * att).sum(axis=1).reshape(-1, K)
    kpy = (p["pos_y"] * att).sum(axis=1).reshape(-1, K)
    kp = jnp.concatenate([kpx, kpy], axis=1)
    return kp @ p["w_lin"].T + p["b_lin"]


if __name__ == "__main__":
    key = jax.random.PRNGKey(0)
    # Small deterministic configs exercising all three conv paths:
    #   (B, in_c, in_h, in_w, out_dim)
    configs = [
        (2, 4, 16, 16, 16),    # C*K = 32  -> unrolled-VPU conv path
        (2, 16, 16, 16, 64),   # C*K = 512 -> MXU (batched dot_general) path
        (13, 8, 8, 16, 16),    # num_kp == in_c -> conv skipped; awkward batch
    ]
    for i, (B, in_c, in_h, in_w, out_dim) in enumerate(configs):
        kx, kp_, key = jax.random.split(key, 3)
        x = jax.random.normal(kx, (B, in_c, in_h, in_w), dtype=jnp.float32)
        params = init_params(kp_, in_c, in_h, in_w, out_dim)

        out = jax.block_until_ready(spatial_projection_pallas(x, params))
        ref = spatial_projection_ref(x, params)

        assert out.shape == (B, out_dim), (i, out.shape)
        max_err = float(jnp.max(jnp.abs(out - ref)))
        assert jnp.allclose(out, ref, atol=1e-4, rtol=1e-4), (
            f"config {i}: max abs err {max_err}")

    print("KERNEL_OK")
</pallas_src>

<mosaic_0001>
module attributes {stable_mosaic.version = 11 : i64} {
  func.func @_spatial_projection_kernel(%arg0: i32, %arg1: memref<1x4x256xf32, #tpu.memory_space<vmem>>, %arg2: memref<8x4xf32, #tpu.memory_space<vmem>>, %arg3: memref<8x1xf32, #tpu.memory_space<vmem>>, %arg4: memref<1x256xf32, #tpu.memory_space<vmem>>, %arg5: memref<1x256xf32, #tpu.memory_space<vmem>>, %arg6: memref<16x16xf32, #tpu.memory_space<vmem>>, %arg7: memref<1x16xf32, #tpu.memory_space<vmem>>, %arg8: memref<1x1x16xf32, #tpu.memory_space<vmem>>) attributes {dimension_semantics = [#tpu.dimension_semantics<parallel>], iteration_bounds = array<i64: 2>, scalar_prefetch = 0 : i64, scratch_operands = 0 : i64, tpu.core_type = #tpu.core_type<tc>, window_params = [{transform_indices = @transform_0, window_bounds = array<i64: 1, 4, 256>}, {pipeline_mode = #tpu.pipeline_mode<synchronous>, transform_indices = @transform_1, window_bounds = array<i64: 8, 4>}, {pipeline_mode = #tpu.pipeline_mode<synchronous>, transform_indices = @transform_2, window_bounds = array<i64: 8, 1>}, {pipeline_mode = #tpu.pipeline_mode<synchronous>, transform_indices = @transform_3, window_bounds = array<i64: 1, 256>}, {pipeline_mode = #tpu.pipeline_mode<synchronous>, transform_indices = @transform_4, window_bounds = array<i64: 1, 256>}, {pipeline_mode = #tpu.pipeline_mode<synchronous>, transform_indices = @transform_5, window_bounds = array<i64: 16, 16>}, {pipeline_mode = #tpu.pipeline_mode<synchronous>, transform_indices = @transform_6, window_bounds = array<i64: 1, 16>}, {transform_indices = @transform_7, window_bounds = array<i64: 1, 1, 16>}]} {
    %c0 = arith.constant 0 : index
    %c0_0 = arith.constant 0 : index
    %0 = vector.load %arg2[%c0, %c0_0] : memref<8x4xf32, #tpu.memory_space<vmem>>, vector<8x4xf32>
    %1 = vector.extract_strided_slice %0 {offsets = [0, 0], sizes = [8, 1], strides = [1, 1]} : vector<8x4xf32> to vector<8x1xf32>
    %2 = vector.shape_cast %1 : vector<8x1xf32> to vector<1x8x1xf32>
    %c0_1 = arith.constant 0 : index
    %c0_2 = arith.constant 0 : index
    %c0_3 = arith.constant 0 : index
    %3 = vector.load %arg1[%c0_1, %c0_2, %c0_3] : memref<1x4x256xf32, #tpu.memory_space<vmem>>, vector<1x1x256xf32>
    %4 = vector.broadcast %2 : vector<1x8x1xf32> to vector<1x8x256xf32>
    %5 = vector.broadcast %3 : vector<1x1x256xf32> to vector<1x8x256xf32>
    %6 = arith.mulf %4, %5 : vector<1x8x256xf32>
    %7 = vector.extract_strided_slice %0 {offsets = [0, 1], sizes = [8, 1], strides = [1, 1]} : vector<8x4xf32> to vector<8x1xf32>
    %8 = vector.shape_cast %7 : vector<8x1xf32> to vector<1x8x1xf32>
    %c0_4 = arith.constant 0 : index
    %c1 = arith.constant 1 : index
    %c0_5 = arith.constant 0 : index
    %9 = vector.load %arg1[%c0_4, %c1, %c0_5] : memref<1x4x256xf32, #tpu.memory_space<vmem>>, vector<1x1x256xf32>
    %10 = vector.broadcast %8 : vector<1x8x1xf32> to vector<1x8x256xf32>
    %11 = vector.broadcast %9 : vector<1x1x256xf32> to vector<1x8x256xf32>
    %12 = arith.mulf %10, %11 : vector<1x8x256xf32>
    %13 = arith.addf %6, %12 : vector<1x8x256xf32>
    %14 = vector.extract_strided_slice %0 {offsets = [0, 2], sizes = [8, 1], strides = [1, 1]} : vector<8x4xf32> to vector<8x1xf32>
    %15 = vector.shape_cast %14 : vector<8x1xf32> to vector<1x8x1xf32>
    %c0_6 = arith.constant 0 : index
    %c2 = arith.constant 2 : index
    %c0_7 = arith.constant 0 : index
    %16 = vector.load %arg1[%c0_6, %c2, %c0_7] : memref<1x4x256xf32, #tpu.memory_space<vmem>>, vector<1x1x256xf32>
    %17 = vector.broadcast %15 : vector<1x8x1xf32> to vector<1x8x256xf32>
    %18 = vector.broadcast %16 : vector<1x1x256xf32> to vector<1x8x256xf32>
    %19 = arith.mulf %17, %18 : vector<1x8x256xf32>
    %20 = arith.addf %13, %19 : vector<1x8x256xf32>
    %21 = vector.extract_strided_slice %0 {offsets = [0, 3], sizes = [8, 1], strides = [1, 1]} : vector<8x4xf32> to vector<8x1xf32>
    %22 = vector.shape_cast %21 : vector<8x1xf32> to vector<1x8x1xf32>
    %c0_8 = arith.constant 0 : index
    %c3 = arith.constant 3 : index
    %c0_9 = arith.constant 0 : index
    %23 = vector.load %arg1[%c0_8, %c3, %c0_9] : memref<1x4x256xf32, #tpu.memory_space<vmem>>, vector<1x1x256xf32>
    %24 = vector.broadcast %22 : vector<1x8x1xf32> to vector<1x8x256xf32>
    %25 = vector.broadcast %23 : vector<1x1x256xf32> to vector<1x8x256xf32>
    %26 = arith.mulf %24, %25 : vector<1x8x256xf32>
    %27 = arith.addf %20, %26 : vector<1x8x256xf32>
    %c0_10 = arith.constant 0 : index
    %c0_11 = arith.constant 0 : index
    %28 = vector.load %arg3[%c0_10, %c0_11] : memref<8x1xf32, #tpu.memory_space<vmem>>, vector<8x1xf32>
    %29 = vector.shape_cast %28 : vector<8x1xf32> to vector<1x8x1xf32>
    %30 = vector.broadcast %29 : vector<1x8x1xf32> to vector<1x8x256xf32>
    %31 = arith.addf %27, %30 : vector<1x8x256xf32>
    %cst = arith.constant dense<0xFF800000> : vector<1x8xf32>
    %32 = vector.multi_reduction <maximumf>, %31, %cst [2] : vector<1x8x256xf32> to vector<1x8xf32>
    %33 = vector.shape_cast %32 : vector<1x8xf32> to vector<1x8x1xf32>
    %34 = vector.broadcast %33 : vector<1x8x1xf32> to vector<1x8x256xf32>
    %35 = arith.subf %31, %34 : vector<1x8x256xf32>
    %36 = math.exp %35 : vector<1x8x256xf32>
    %cst_12 = arith.constant dense<0.000000e+00> : vector<1x8xf32>
    %37 = vector.multi_reduction <add>, %36, %cst_12 [2] : vector<1x8x256xf32> to vector<1x8xf32>
    %c0_13 = arith.constant 0 : index
    %c0_14 = arith.constant 0 : index
    %38 = vector.load %arg4[%c0_13, %c0_14] : memref<1x256xf32, #tpu.memory_space<vmem>>, vector<1x256xf32>
    %39 = vector.shape_cast %38 : vector<1x256xf32> to vector<1x1x256xf32>
    %c0_15 = arith.constant 0 : index
    %c0_16 = arith.constant 0 : index
    %40 = vector.load %arg5[%c0_15, %c0_16] : memref<1x256xf32, #tpu.memory_space<vmem>>, vector<1x256xf32>
    %41 = vector.shape_cast %40 : vector<1x256xf32> to vector<1x1x256xf32>
    %42 = vector.broadcast %39 : vector<1x1x256xf32> to vector<1x8x256xf32>
    %43 = arith.mulf %36, %42 : vector<1x8x256xf32>
    %cst_17 = arith.constant dense<0.000000e+00> : vector<1x8xf32>
    %44 = vector.multi_reduction <add>, %43, %cst_17 [2] : vector<1x8x256xf32> to vector<1x8xf32>
    %45 = arith.divf %44, %37 : vector<1x8xf32>
    %46 = vector.broadcast %41 : vector<1x1x256xf32> to vector<1x8x256xf32>
    %47 = arith.mulf %36, %46 : vector<1x8x256xf32>
    %cst_18 = arith.constant dense<0.000000e+00> : vector<1x8xf32>
    %48 = vector.multi_reduction <add>, %47, %cst_18 [2] : vector<1x8x256xf32> to vector<1x8xf32>
    %49 = arith.divf %48, %37 : vector<1x8xf32>
    %c0_19 = arith.constant 0 : index
    %c0_20 = arith.constant 0 : index
    %50 = vector.load %arg6[%c0_19, %c0_20] : memref<16x16xf32, #tpu.memory_space<vmem>>, vector<16x16xf32>
    %51 = vector.extract_strided_slice %50 {offsets = [0, 0], sizes = [8, 16], strides = [1, 1]} : vector<16x16xf32> to vector<8x16xf32>
    %cst_21 = arith.constant dense<0.000000e+00> : vector<1x16xf32>
    %52 = tpu.matmul %45, %51, %cst_21 {dimension_numbers = #tpu.dot_dimension_numbers<[1], [0], [0], [1], [0, 0, 1, 1], [], []>} : vector<1x8xf32>, vector<8x16xf32>, vector<1x16xf32> -> vector<1x16xf32>
    %53 = vector.extract_strided_slice %50 {offsets = [8, 0], sizes = [8, 16], strides = [1, 1]} : vector<16x16xf32> to vector<8x16xf32>
    %cst_22 = arith.constant dense<0.000000e+00> : vector<1x16xf32>
    %54 = tpu.matmul %49, %53, %cst_22 {dimension_numbers = #tpu.dot_dimension_numbers<[1], [0], [0], [1], [0, 0, 1, 1], [], []>} : vector<1x8xf32>, vector<8x16xf32>, vector<1x16xf32> -> vector<1x16xf32>
    %55 = arith.addf %52, %54 : vector<1x16xf32>
    %c0_23 = arith.constant 0 : index
    %c0_24 = arith.constant 0 : index
    %56 = vector.load %arg7[%c0_23, %c0_24] : memref<1x16xf32, #tpu.memory_space<vmem>>, vector<1x16xf32>
    %57 = arith.addf %55, %56 : vector<1x16xf32>
    %c0_25 = arith.constant 0 : index
    %c0_26 = arith.constant 0 : index
    %c0_27 = arith.constant 0 : index
    %58 = vector.load %arg8[%c0_25, %c0_26, %c0_27] : memref<1x1x16xf32, #tpu.memory_space<vmem>>, vector<1x1x16xf32>
    %59 = vector.shape_cast %58 : vector<1x1x16xf32> to vector<1x16xf32>
    %60 = vector.shape_cast %57 : vector<1x16xf32> to vector<1x1x16xf32>
    tpu.vector_store %arg8[%c0_25, %c0_26, %c0_27], %60 {strides = array<i32>} : memref<1x1x16xf32, #tpu.memory_space<vmem>>, vector<1x1x16xf32>,
    return
  }
  func.func @transform_0(%arg0: i32) -> (i32, i32, i32) {
    %c0_i32 = arith.constant 0 : i32
    %c0_i32_0 = arith.constant 0 : i32
    %c0_i32_1 = arith.constant 0 : i32
    return %arg0, %c0_i32, %c0_i32_0 : i32, i32, i32
  }
  func.func @transform_1(%arg0: i32) -> (i32, i32) {
    %c0_i32 = arith.constant 0 : i32
    %c0_i32_0 = arith.constant 0 : i32
    %c0_i32_1 = arith.constant 0 : i32
    return %c0_i32, %c0_i32_0 : i32, i32
  }
  func.func @transform_2(%arg0: i32) -> (i32, i32) {
    %c0_i32 = arith.constant 0 : i32
    %c0_i32_0 = arith.constant 0 : i32
    %c0_i32_1 = arith.constant 0 : i32
    return %c0_i32, %c0_i32_0 : i32, i32
  }
  func.func @transform_3(%arg0: i32) -> (i32, i32) {
    %c0_i32 = arith.constant 0 : i32
    %c0_i32_0 = arith.constant 0 : i32
    %c0_i32_1 = arith.constant 0 : i32
    return %c0_i32, %c0_i32_0 : i32, i32
  }
  func.func @transform_4(%arg0: i32) -> (i32, i32) {
    %c0_i32 = arith.constant 0 : i32
    %c0_i32_0 = arith.constant 0 : i32
    %c0_i32_1 = arith.constant 0 : i32
    return %c0_i32, %c0_i32_0 : i32, i32
  }
  func.func @transform_5(%arg0: i32) -> (i32, i32) {
    %c0_i32 = arith.constant 0 : i32
    %c0_i32_0 = arith.constant 0 : i32
    %c0_i32_1 = arith.constant 0 : i32
    return %c0_i32, %c0_i32_0 : i32, i32
  }
  func.func @transform_6(%arg0: i32) -> (i32, i32) {
    %c0_i32 = arith.constant 0 : i32
    %c0_i32_0 = arith.constant 0 : i32
    %c0_i32_1 = arith.constant 0 : i32
    return %c0_i32, %c0_i32_0 : i32, i32
  }
  func.func @transform_7(%arg0: i32) -> (i32, i32, i32) {
    %c0_i32 = arith.constant 0 : i32
    %c0_i32_0 = arith.constant 0 : i32
    %c0_i32_1 = arith.constant 0 : i32
    return %arg0, %c0_i32, %c0_i32_0 : i32, i32, i32
  }
}

</mosaic_0001>

<llo_original>
// kernel: tpu_custom_call.1
$region0: #{tpu_custom_call.1}
  #allocation0 [shape = 'u32[]', space=smem, size = 0x4, offset = 0x4, fixed_abs, tag = 'smem constant byte address 0x4 - core index']
  #allocation1 [shape = 'u32[144,128]{1,0:T(1,128)}', space=vmem, size = 0x12000, scoped, tag = 'internal scratch']
  %s0 = inlined_call_operand.vmem [shape: f32[2,4,256], index: 0, kind: input, shape index: {}]
  %s1 = inlined_call_operand.vmem [shape: f32[8,4], index: 1, kind: input, shape index: {}]
  %s2 = inlined_call_operand.vmem [shape: f32[8,1], index: 2, kind: input, shape index: {}]
  %s3 = inlined_call_operand.hbm [shape: f32[1,256], index: 3, kind: input, shape index: {}]
  %s4 = inlined_call_operand.vmem [shape: f32[1,256], index: 4, kind: input, shape index: {}]
  %s5 = inlined_call_operand.vmem [shape: f32[16,16], index: 5, kind: input, shape index: {}]
  %s6 = inlined_call_operand.vmem [shape: f32[1,16], index: 6, kind: input, shape index: {}]
  %s7 = inlined_call_operand.hbm [shape: f32[2,1,16], index: 7, kind: output, shape index: {}]
  %s8 = sld [smem:[#allocation0]]
  $region65: #{tpu_custom_call.1} parent=0
    _
  %s10 = ssub.s32 1, %s8
  %s11 = scalar_select 0, %s10, %s8
  $region1: #{tpu_custom_call.1} parent=0
    #allocation2 [shape = 'u8[1024]{0}', space=vmem, size = 0x400, scoped, tag = 'input window, operand 3, single buffered']
    #allocation3 [shape = 's32[2]{0}', space=sflag, size = 0x8, scoped, tag = 'scoped memory for tpu_custom_call.1']
    #allocation4 [shape = 's32[2]{0}', space=sflag, size = 0x8, scoped, tag = 'scoped memory for tpu_custom_call.1']
    #allocation5 [shape = 'u8[1024]{0}', space=vmem, size = 0x400, scoped, tag = 'output window, operand 0']
    %12 = vsyncpa [#allocation3], 0
    %13 = vsyncpa [#allocation4], 0
    %s14 = scalar_lea.sflag [#allocation4], 1
    %15 = vsyncpa %s14, 0
    loop: start=0, step=1, limit=4
    $region2: #{tpu_custom_call.1} parent=1 // loop_pre_header
      _
    $region3: #{tpu_custom_call.1} parent=1 // loop_header
      %s17 = sphi 0, %s21
      %p18 = scmp.ge.s32.totalorder %s17, 4
      %s27 = sphi 0, %s29
      %s30 = sphi 0, %s27
      %s31 = sphi 0, %s30
      %s47 = sphi 0, %s31
      %s51 = sphi 0, %s51
      %s53 = sphi 0, %s51
      %s54 = sphi 0, %s53
      %s68 = sphi 0, %s54
      %s72 = sphi 0, %s72
      %s74 = sphi 0, %s72
      %s75 = sphi 0, %s74
      %s89 = sphi 0, %s75
      %s93 = sphi 0, %s93
      %s95 = sphi 0, %s93
      %s96 = sphi 0, %s95
      %s110 = sphi 0, %s96
      %s114 = sphi 0, %s114
      %s116 = sphi 0, %s114
      %s117 = sphi 0, %s116
      %s131 = sphi 0, %s117
      %s135 = sphi 0, %s135
      %s137 = sphi 0, %s135
      %s138 = sphi 0, %s137
      %s152 = sphi 0, %s138
      %s156 = sphi 0, %s156
      %s158 = sphi 0, %s156
      %s159 = sphi 0, %s158
      %s173 = sphi 0, %s159
      %s179 = sphi 0, %s181
      %s182 = sphi 0, %s179
      %s183 = sphi 0, %s182
      %s199 = sphi 0, %s183
    $region4: #{tpu_custom_call.1} parent=1 // loop_header_branch
      %20 = sbr.rel (%p18) target = $region8
    $region5: #{tpu_custom_call.1} parent=1 // loop_body
      %s22 = ssub.s32 %s17, 1
      %s23 = ssub.s32 %s17, 2
      %s24 = sadd.s32 %s17, 1
      %s25 = ssub.s32 %s17, %s24
      %p26 = scmp.eq.s32.totalorder %s25, 0
      %s28 = sadd.s32 %s27, 1
      %s29 = scalar_select %p26, %s27, %s28
      %p32 = pneg %p26
      %p33 = scmp.eq.s32.totalorder %s17, 1
      %p34 = por %p32, %p33
      %p35 = scmp.ne.s32.totalorder %s27, %s30
      %p36 = scmp.eq.s32.totalorder %s17, 0
      %p37 = por %p35, %p36
      %p38 = scmp.ne.s32.totalorder %s27, %s30
      %p39 = scmp.eq.s32.totalorder %s22, 1
      %p40 = por %p38, %p39
      %p41 = scmp.ne.s32.totalorder %s30, %s31
      %p42 = scmp.eq.s32.totalorder %s22, 0
      %p43 = por %p41, %p42
      %p44 = scmp.ne.s32.totalorder %s30, %s31
      %p45 = scmp.eq.s32.totalorder %s23, 1
      %p46 = por %p44, %p45
      %p48 = scmp.ne.s32.totalorder %s31, %s47
      %p49 = scmp.eq.s32.totalorder %s23, 0
      %p50 = por %p48, %p49
      %s52 = sadd.s32 %s51, 1
      %p55 = scmp.eq.s32.totalorder %s17, 1
      %p56 = scmp.ne.s32.totalorder %s51, %s53
      %p57 = scmp.eq.s32.totalorder %s17, 0
      %p58 = por %p56, %p57
      %p59 = scmp.ne.s32.totalorder %s51, %s53
      %p60 = scmp.eq.s32.totalorder %s22, 1
      %p61 = por %p59, %p60
      %p62 = scmp.ne.s32.totalorder %s53, %s54
      %p63 = scmp.eq.s32.totalorder %s22, 0
      %p64 = por %p62, %p63
      %p65 = scmp.ne.s32.totalorder %s53, %s54
      %p66 = scmp.eq.s32.totalorder %s23, 1
      %p67 = por %p65, %p66
      %p69 = scmp.ne.s32.totalorder %s54, %s68
      %p70 = scmp.eq.s32.totalorder %s23, 0
      %p71 = por %p69, %p70
      %s73 = sadd.s32 %s72, 1
      %p76 = scmp.eq.s32.totalorder %s17, 1
      %p77 = scmp.ne.s32.totalorder %s72, %s74
      %p78 = scmp.eq.s32.totalorder %s17, 0
      %p79 = por %p77, %p78
      %p80 = scmp.ne.s32.totalorder %s72, %s74
      %p81 = scmp.eq.s32.totalorder %s22, 1
      %p82 = por %p80, %p81
      %p83 = scmp.ne.s32.totalorder %s74, %s75
      %p84 = scmp.eq.s32.totalorder %s22, 0
      %p85 = por %p83, %p84
      %p86 = scmp.ne.s32.totalorder %s74, %s75
      %p87 = scmp.eq.s32.totalorder %s23, 1
      %p88 = por %p86, %p87
      %p90 = scmp.ne.s32.totalorder %s75, %s89
      %p91 = scmp.eq.s32.totalorder %s23, 0
      %p92 = por %p90, %p91
      %s94 = sadd.s32 %s93, 1
      %p97 = scmp.eq.s32.totalorder %s17, 1
      %p98 = scmp.ne.s32.totalorder %s93, %s95
      %p99 = scmp.eq.s32.totalorder %s17, 0
      %p100 = por %p98, %p99
      %p101 = scmp.ne.s32.totalorder %s93, %s95
      %p102 = scmp.eq.s32.totalorder %s22, 1
      %p103 = por %p101, %p102
      %p104 = scmp.ne.s32.totalorder %s95, %s96
      %p105 = scmp.eq.s32.totalorder %s22, 0
      %p106 = por %p104, %p105
      %p107 = scmp.ne.s32.totalorder %s95, %s96
      %p108 = scmp.eq.s32.totalorder %s23, 1
      %p109 = por %p107, %p108
      %p111 = scmp.ne.s32.totalorder %s96, %s110
      %p112 = scmp.eq.s32.totalorder %s23, 0
      %p113 = por %p111, %p112
      %s115 = sadd.s32 %s114, 1
      %p118 = scmp.eq.s32.totalorder %s17, 1
      %p119 = scmp.ne.s32.totalorder %s114, %s116
      %p120 = scmp.eq.s32.totalorder %s17, 0
      %p121 = por %p119, %p120
      %p122 = scmp.ne.s32.totalorder %s114, %s116
      %p123 = scmp.eq.s32.totalorder %s22, 1
      %p124 = por %p122, %p123
      %p125 = scmp.ne.s32.totalorder %s116, %s117
      %p126 = scmp.eq.s32.totalorder %s22, 0
      %p127 = por %p125, %p126
      %p128 = scmp.ne.s32.totalorder %s116, %s117
      %p129 = scmp.eq.s32.totalorder %s23, 1
      %p130 = por %p128, %p129
      %p132 = scmp.ne.s32.totalorder %s117, %s131
      %p133 = scmp.eq.s32.totalorder %s23, 0
      %p134 = por %p132, %p133
      %s136 = sadd.s32 %s135, 1
      %p139 = scmp.eq.s32.totalorder %s17, 1
      %p140 = scmp.ne.s32.totalorder %s135, %s137
      %p141 = scmp.eq.s32.totalorder %s17, 0
      %p142 = por %p140, %p141
      %p143 = scmp.ne.s32.totalorder %s135, %s137
      %p144 = scmp.eq.s32.totalorder %s22, 1
      %p145 = por %p143, %p144
      %p146 = scmp.ne.s32.totalorder %s137, %s138
      %p147 = scmp.eq.s32.totalorder %s22, 0
      %p148 = por %p146, %p147
      %p149 = scmp.ne.s32.totalorder %s137, %s138
      %p150 = scmp.eq.s32.totalorder %s23, 1
      %p151 = por %p149, %p150
      %p153 = scmp.ne.s32.totalorder %s138, %s152
      %p154 = scmp.eq.s32.totalorder %s23, 0
      %p155 = por %p153, %p154
      %s157 = sadd.s32 %s156, 1
      %p160 = scmp.eq.s32.totalorder %s17, 1
      %p161 = scmp.ne.s32.totalorder %s156, %s158
      %p162 = scmp.eq.s32.totalorder %s17, 0
      %p163 = por %p161, %p162
      %p164 = scmp.ne.s32.totalorder %s156, %s158
      %p165 = scmp.eq.s32.totalorder %s22, 1
      %p166 = por %p164, %p165
      %p167 = scmp.ne.s32.totalorder %s158, %s159
      %p168 = scmp.eq.s32.totalorder %s22, 0
      %p169 = por %p167, %p168
      %p170 = scmp.ne.s32.totalorder %s158, %s159
      %p171 = scmp.eq.s32.totalorder %s23, 1
      %p172 = por %p170, %p171
      %p174 = scmp.ne.s32.totalorder %s159, %s173
      %p175 = scmp.eq.s32.totalorder %s23, 0
      %p176 = por %p174, %p175
      %s177 = ssub.s32 %s17, %s24
      %p178 = scmp.eq.s32.totalorder %s177, 0
      %s180 = sadd.s32 %s179, 1
      %s181 = scalar_select %p178, %s179, %s180
      %p184 = pneg %p178
      %p185 = scmp.eq.s32.totalorder %s17, 1
      %p186 = por %p184, %p185
      %p187 = scmp.ne.s32.totalorder %s179, %s182
      %p188 = scmp.eq.s32.totalorder %s17, 0
      %p189 = por %p187, %p188
      %p190 = scmp.ne.s32.totalorder %s179, %s182
      %p191 = scmp.eq.s32.totalorder %s22, 1
      %p192 = por %p190, %p191
      %p193 = scmp.ne.s32.totalorder %s182, %s183
      %p194 = scmp.eq.s32.totalorder %s22, 0
      %p195 = por %p193, %p194
      %p196 = scmp.ne.s32.totalorder %s182, %s183
      %p197 = scmp.eq.s32.totalorder %s23, 1
      %p198 = por %p196, %p197
      %p200 = scmp.ne.s32.totalorder %s183, %s199
      %p201 = scmp.eq.s32.totalorder %s23, 0
      %p202 = por %p200, %p201
      %p203 = scmp.le.s32.totalorder 1, %s17
      %p204 = scmp.lt.s32.totalorder %s17, 3
      %p205 = pnand %p203, %p204
      %p206 = pneg %p205
      // Predicated region
      $region9: #{tpu_custom_call.1} parent=5 // pred_check
        _
      $region10: #{tpu_custom_call.1} parent=5 // pred_check_branch
        %208 = sbr.rel (%p205) target = $region12
      $region11: #{tpu_custom_call.1} parent=5 // pred_region
        %s209 = ssub.s32 %s17, 1
        // Predicated region
        $region13: #{tpu_custom_call.1} parent=11 // pred_check
          %p210 = pneg %p64
        $region14: #{tpu_custom_call.1} parent=11 // pred_check_branch
          %212 = sbr.rel (%p210) target = $region16
        $region15: #{tpu_custom_call.1} parent=11 // pred_region
          _
        $region16: #{tpu_custom_call.1} parent=11 // pred_fallthru
          _
        // Predicated region
        $region17: #{tpu_custom_call.1} parent=11 // pred_check
          %p213 = pneg %p85
        $region18: #{tpu_custom_call.1} parent=11 // pred_check_branch
          %215 = sbr.rel (%p213) target = $region20
        $region19: #{tpu_custom_call.1} parent=11 // pred_region
          _
        $region20: #{tpu_custom_call.1} parent=11 // pred_fallthru
          _
        // Predicated region
        $region21: #{tpu_custom_call.1} parent=11 // pred_check
          %p216 = pneg %p106
        $region22: #{tpu_custom_call.1} parent=11 // pred_check_branch
          %218 = sbr.rel (%p216) target = $region24
        $region23: #{tpu_custom_call.1} parent=11 // pred_region
          %s220 = ssub.s32 32, 32
          %221 = vsyncadd [#allocation3], %s220
          %s223 = sshll.u32 [#allocation2], 4
          %s224 = int_to_ptr.vmem [resolvable:$true] %s223
          %226 = dma.hbm_to_vmem [thread:$0]  %s3, 32, %s224, [#allocation3]
        $region24: #{tpu_custom_call.1} parent=11 // pred_fallthru
          _
        // Predicated region
        $region25: #{tpu_custom_call.1} parent=11 // pred_check
          %p227 = pneg %p127
        $region26: #{tpu_custom_call.1} parent=11 // pred_check_branch
          %229 = sbr.rel (%p227) target = $region28
        $region27: #{tpu_custom_call.1} parent=11 // pred_region
          _
        $region28: #{tpu_custom_call.1} parent=11 // pred_fallthru
          _
        // Predicated region
        $region29: #{tpu_custom_call.1} parent=11 // pred_check
          %p230 = pneg %p148
        $region30: #{tpu_custom_call.1} parent=11 // pred_check_branch
          %232 = sbr.rel (%p230) target = $region32
        $region31: #{tpu_custom_call.1} parent=11 // pred_region
          _
        $region32: #{tpu_custom_call.1} parent=11 // pred_fallthru
          _
        // Predicated region
        $region33: #{tpu_custom_call.1} parent=11 // pred_check
          %p233 = pneg %p169
        $region34: #{tpu_custom_call.1} parent=11 // pred_check_branch
          %235 = sbr.rel (%p233) target = $region36
        $region35: #{tpu_custom_call.1} parent=11 // pred_region
          _
        $region36: #{tpu_custom_call.1} parent=11 // pred_fallthru
          _
      $region12: #{tpu_custom_call.1} parent=5 // pred_fallthru
        _
      %p236 = scmp.lt.s32.totalorder %s17, 2
      // Predicated region
      $region37: #{tpu_custom_call.1} parent=5 // pred_check
        %p237 = pneg %p236
      $region38: #{tpu_custom_call.1} parent=5 // pred_check_branch
        %239 = sbr.rel (%p237) target = $region40
      $region39: #{tpu_custom_call.1} parent=5 // pred_region
        // Predicated region
        $region41: #{tpu_custom_call.1} parent=39 // pred_check
          %p240 = pneg %p37
        $region42: #{tpu_custom_call.1} parent=39 // pred_check_branch
          %242 = sbr.rel (%p240) target = $region44
        $region43: #{tpu_custom_call.1} parent=39 // pred_region
          %p243 = scmp.lt.s32.totalorder %s17, 1
          %s244 = scalar_select %p243, %s17, 1
          %s245 = smul.addr %s244, 2
          %s246 = smul.addr %s245, 4
          %s247 = scalar_lea.vmem %s0, %s246
        $region44: #{tpu_custom_call.1} parent=39 // pred_fallthru
          _
      $region40: #{tpu_custom_call.1} parent=5 // pred_fallthru
        _
      %p248 = scmp.le.s32.totalorder 1, %s17
      %p249 = scmp.lt.s32.totalorder %s17, 3
      %p250 = pnand %p248, %p249
      %p251 = pneg %p250
      // Predicated region
      $region45: #{tpu_custom_call.1} parent=5 // pred_check
        _
      $region46: #{tpu_custom_call.1} parent=5 // pred_check_branch
        %253 = sbr.rel (%p250) target = $region48
      $region47: #{tpu_custom_call.1} parent=5 // pred_region
        %s254 = ssub.s32 %s17, 1
        // Predicated region
        $region49: #{tpu_custom_call.1} parent=47 // pred_check
          %p255 = pneg %p106
        $region50: #{tpu_custom_call.1} parent=47 // pred_check_branch
          %257 = sbr.rel (%p255) target = $region52
        $region51: #{tpu_custom_call.1} parent=47 // pred_region
          %258 = dma.done [#allocation3], 32
        $region52: #{tpu_custom_call.1} parent=47 // pred_fallthru
          _
        %p259 = scmp.lt.s32.totalorder %s22, 1
        %s260 = scalar_select %p259, %s22, 1
        %s261 = smul.addr %s260, 2
        %s262 = smul.addr %s261, 4
        %s263 = scalar_lea.vmem %s0, %s262
        %p264 = pneg %p43
        %p265 = pneg %p40
        %p266 = pneg %p64
        %p267 = pneg %p61
        %p268 = pneg %p85
        %p269 = pneg %p82
        %p270 = pneg %p106
        %p271 = pneg %p103
        %p272 = pneg %p127
        %p273 = pneg %p124
        %p274 = pneg %p148
        %p275 = pneg %p145
        %p276 = pneg %p169
        %p277 = pneg %p166
        %p278 = pneg %p195
        %p279 = pneg %p192
        %s280 = sand.u32 %s182, 1
        %s281 = scalar_lea.sflag [#allocation4], %s280
        %s282 = sand.u32 %s182, 1
        %s283 = scalar_lea.vmem [#allocation5], %s282
        %p284 = scmp.lt.s32.totalorder %s22, 1
        %s285 = scalar_select %p284, %s22, 1
        %s286 = smul.addr %s285, 2
        %s287 = smul.addr %s286, 4
        %s288 = scalar_lea.vmem %s0, %s287
        %v289 = vld [vmem:[%s1] sm:$0xff]
        %v290 = vld [vmem:[%s288] ss:$4 sm:$0x3]
        %292 = vset.pattern.permute.xlu0 0
        %293 = vperm.xlu0 %292, %v289
        %v294 = vpop.permute.xlu0 %293
        %v297 = vlaneseq
        %v298 = vshrl.u32 %v297, 7
        %v299 = vsub.s32 0, %v298
        %v300 = vrot.slane %v290, %v299
        %v301 = vlaneseq
        %v302 = vshrl.u32 %v301, 7
        %v303 = vsub.s32 1, %v302
        %v304 = vrot.slane %v290, %v303
        %v307 = vmul.f32 %v294, %v300
        %v308 = vmul.f32 %v294, %v304
        %s309 = scalar_lea.vmem %s288, 1
        %v310 = vld [vmem:[%s309] ss:$4 sm:$0x3]
        %311 = vset.pattern.permute.xlu0 1
        %312 = vperm.xlu0 %311, %v289
        %v313 = vpop.permute.xlu0 %312
        %v316 = vlaneseq
        %v317 = vshrl.u32 %v316, 7
        %v318 = vsub.s32 0, %v317
        %v319 = vrot.slane %v310, %v318
        %v320 = vlaneseq
        %v321 = vshrl.u32 %v320, 7
        %v322 = vsub.s32 1, %v321
        %v323 = vrot.slane %v310, %v322
        %v326 = vmul.f32 %v313, %v319
        %v327 = vmul.f32 %v313, %v323
        %v328 = vadd.f32 %v307, %v326
        %v329 = vadd.f32 %v308, %v327
        %s330 = scalar_lea.vmem %s288, 2
        %v331 = vld [vmem:[%s330] ss:$4 sm:$0x3]
        %332 = vset.pattern.permute.xlu0 2
        %333 = vperm.xlu0 %332, %v289
        %v334 = vpop.permute.xlu0 %333
        %v337 = vlaneseq
        %v338 = vshrl.u32 %v337, 7
        %v339 = vsub.s32 0, %v338
        %v340 = vrot.slane %v331, %v339
        %v341 = vlaneseq
        %v342 = vshrl.u32 %v341, 7
        %v343 = vsub.s32 1, %v342
        %v344 = vrot.slane %v331, %v343
        %v347 = vmul.f32 %v334, %v340
        %v348 = vmul.f32 %v334, %v344
        %v349 = vadd.f32 %v328, %v347
        %v350 = vadd.f32 %v329, %v348
        %s351 = scalar_lea.vmem %s288, 3
        %v352 = vld [vmem:[%s351] ss:$4 sm:$0x3]
        %353 = vset.pattern.permute.xlu0 3
        %354 = vperm.xlu0 %353, %v289
        %v355 = vpop.permute.xlu0 %354
        %v358 = vlaneseq
        %v359 = vshrl.u32 %v358, 7
        %v360 = vsub.s32 0, %v359
        %v361 = vrot.slane %v352, %v360
        %v362 = vlaneseq
        %v363 = vshrl.u32 %v362, 7
        %v364 = vsub.s32 1, %v363
        %v365 = vrot.slane %v352, %v364
        %v368 = vmul.f32 %v355, %v361
        %v369 = vmul.f32 %v355, %v365
        %v370 = vadd.f32 %v349, %v368
        %v371 = vadd.f32 %v350, %v369
        %v372 = vld [vmem:[%s2] sm:$0xff]
        %374 = vset.pattern.permute.xlu0 0
        %375 = vperm.xlu0 %374, %v372
        %v376 = vpop.permute.xlu0 %375
        %v378 = vadd.f32 %v370, %v376
        %v379 = vadd.f32 %v371, %v376
        %v380 = vmax.f32 %v378, %v379
        %381 = vmax.xlane.f32.xlu0 %v380
        %v382 = vpop.xlane.xlu0 %381
        %v383 = vsub.f32 %v378, %v382
        %v384 = vsub.f32 %v379, %v382
        %v385 = vmul.f32 %v383, 1.442695
        %v386 = vpow.pop %v385
        %v387 = vmul.f32 %v384, 1.442695
        %v388 = vpow.pop %v387
        %v389 = vadd.f32 %v386, %v388
        %390 = vadd.xlane.f32.xlu0 %v389
        %v391 = vpop.xlane.xlu0 %390
        %v392 = vld [vmem:[#allocation2] sm:$0x3]
        %v393 = vld [vmem:[%s4] sm:$0x3]
        %v395 = vlaneseq
        %v396 = vshrl.u32 %v395, 7
        %v397 = vsub.s32 0, %v396
        %v398 = vrot.slane %v392, %v397
        %v399 = vlaneseq
        %v400 = vshrl.u32 %v399, 7
        %v401 = vsub.s32 1, %v400
        %v402 = vrot.slane %v392, %v401
        %v405 = vmul.f32 %v386, %v398
        %v406 = vmul.f32 %v388, %v402
        %v407 = vadd.f32 %v405, %v406
        %408 = vadd.xlane.f32.xlu0 %v407
        %v409 = vpop.xlane.xlu0 %408
        %v410 = vrcp.pop %v391
        %v411 = vmul.f32 %v409, %v410
        %v413 = vlaneseq
        %v414 = vshrl.u32 %v413, 7
        %v415 = vsub.s32 0, %v414
        %v416 = vrot.slane %v393, %v415
        %v417 = vlaneseq
        %v418 = vshrl.u32 %v417, 7
        %v419 = vsub.s32 1, %v418
        %v420 = vrot.slane %v393, %v419
        %v423 = vmul.f32 %v386, %v416
        %v424 = vmul.f32 %v388, %v420
        %v425 = vadd.f32 %v423, %v424
        %426 = vadd.xlane.f32.xlu0 %v425
        %v427 = vpop.xlane.xlu0 %426
        %v428 = vmul.f32 %v427, %v410
        %v429 = vld [vmem:[%s5] sm:$0xff]
        %v430 = vld [vmem:[%s5 + $0x8] sm:$0xff]
        %v432 = vlaneseq
        %v433 = vand.u32 %v432, 127
        %v434 = vlaneseq
        %v435 = vshrl.u32 %v434, 7
        %v436 = vsub.s32 %v433, %v435
        %v437 = vrot.slane %v428, %v436
        %vm438 = vcmask 64512
        %v439 = vsel %vm438, %v437, 0
        %441 = vmatprep.subr.mxu0 0.0
        %442 = vmatpush1.msra.mxu0 %v430
        %443 = vmatprep.subr.mxu0 0.0
        %444 = vmatpush1.msra.mxu0 0.0
        %445 = vmatprep.subr.mxu0 0.0
        %446 = vmatpush1.msra.mxu0 0.0
        %447 = vmatprep.subr.mxu0 0.0
        %448 = vmatpush1.msra.mxu0 0.0
        %449 = vmatprep.subr.mxu0 0.0
        %450 = vmatpush1.msra.mxu0 0.0
        %451 = vmatprep.subr.mxu0 0.0
        %452 = vmatpush1.msra.mxu0 0.0
        %453 = vmatprep.subr.mxu0 0.0
        %454 = vmatpush1.msra.mxu0 0.0
        %455 = vmatprep.subr.mxu0 0.0
        %456 = vmatpush1.msra.mxu0 0.0
        %457 = vmatprep.subr.mxu0 0.0
        %458 = vmatpush1.msra.mxu0 0.0
        %459 = vmatprep.subr.mxu0 0.0
        %460 = vmatpush1.msra.mxu0 0.0
        %461 = vmatprep.subr.mxu0 0.0
        %462 = vmatpush1.msra.mxu0 0.0
        %463 = vmatprep.subr.mxu0 0.0
        %464 = vmatpush1.msra.mxu0 0.0
        %465 = vmatprep.subr.mxu0 0.0
        %466 = vmatpush1.msra.mxu0 0.0
        %467 = vmatprep.subr.mxu0 0.0
        %468 = vmatpush1.msra.mxu0 0.0
        %469 = vmatprep.subr.mxu0 0.0
        %470 = vmatpush1.msra.mxu0 0.0
        %471 = vmatprep.subr.mxu0 0.0
        %472 = vmatpush1.msra.mxu0 0.0
        %473 = vmatprep.subr.mxu0 0.0
        %474 = vmatpush1.msra.mxu0 0.0
        %475 = vmatprep.subr.mxu0 0.0
        %476 = vmatpush1.msra.mxu0 0.0
        %477 = vmatprep.subr.mxu0 0.0
        %478 = vmatpush1.msra.mxu0 0.0
        %479 = vmatprep.subr.mxu0 0.0
        %480 = vmatpush1.msra.mxu0 0.0
        %481 = vmatprep.subr.mxu0 0.0
        %482 = vmatpush1.msra.mxu0 0.0
        %483 = vmatprep.subr.mxu0 0.0
        %484 = vmatpush1.msra.mxu0 0.0
        %485 = vmatprep.subr.mxu0 0.0
        %486 = vmatpush1.msra.mxu0 0.0
        %487 = vmatprep.subr.mxu0 0.0
        %488 = vmatpush1.msra.mxu0 0.0
        %489 = vmatprep.subr.mxu0 0.0
        %490 = vmatpush1.msra.mxu0 0.0
        %491 = vmatprep.subr.mxu0 0.0
        %492 = vmatpush1.msra.mxu0 0.0
        %493 = vmatprep.subr.mxu0 0.0
        %494 = vmatpush1.msra.mxu0 0.0
        %495 = vmatprep.subr.mxu0 0.0
        %496 = vmatpush1.msra.mxu0 0.0
        %497 = vmatprep.subr.mxu0 0.0
        %498 = vmatpush1.msra.mxu0 0.0
        %499 = vmatprep.subr.mxu0 0.0
        %500 = vmatpush1.msra.mxu0 0.0
        %501 = vmatprep.subr.mxu0 0.0
        %502 = vmatpush1.msra.mxu0 0.0
        %503 = vmatprep.subr.mxu0 0.0
        %504 = vmatpush1.msra.mxu0 0.0
        %505 = vmatprep.mubr.f32.mxu0 0.0
        %506 = vmatmul.mubr.f32.gmra.mrb[0].mxu0 %v439
        %v507 = vpop.f32.mrb[0].mxu0
        %v508 = vadd.f32 0.0, %v507
        %v509 = vpop.f32.mrb[0].mxu0
        %510 = vdwg.mxu0
        %v512 = vlaneseq
        %v513 = vshrl.u32 %v512, 7
        %v514 = vsub.s32 %v433, %v513
        %v515 = vrot.slane %v411, %v514
        %v516 = vsel %vm438, %v515, 0
        %518 = vmatprep.subr.mxu0 0.0
        %519 = vmatpush1.msra.mxu0 %v429
        %520 = vmatprep.subr.mxu0 0.0
        %521 = vmatpush1.msra.mxu0 0.0
        %522 = vmatprep.subr.mxu0 0.0
        %523 = vmatpush1.msra.mxu0 0.0
        %524 = vmatprep.subr.mxu0 0.0
        %525 = vmatpush1.msra.mxu0 0.0
        %526 = vmatprep.subr.mxu0 0.0
        %527 = vmatpush1.msra.mxu0 0.0
        %528 = vmatprep.subr.mxu0 0.0
        %529 = vmatpush1.msra.mxu0 0.0
        %530 = vmatprep.subr.mxu0 0.0
        %531 = vmatpush1.msra.mxu0 0.0
        %532 = vmatprep.subr.mxu0 0.0
        %533 = vmatpush1.msra.mxu0 0.0
        %534 = vmatprep.subr.mxu0 0.0
        %535 = vmatpush1.msra.mxu0 0.0
        %536 = vmatprep.subr.mxu0 0.0
        %537 = vmatpush1.msra.mxu0 0.0
        %538 = vmatprep.subr.mxu0 0.0
        %539 = vmatpush1.msra.mxu0 0.0
        %540 = vmatprep.subr.mxu0 0.0
        %541 = vmatpush1.msra.mxu0 0.0
        %542 = vmatprep.subr.mxu0 0.0
        %543 = vmatpush1.msra.mxu0 0.0
        %544 = vmatprep.subr.mxu0 0.0
        %545 = vmatpush1.msra.mxu0 0.0
        %546 = vmatprep.subr.mxu0 0.0
        %547 = vmatpush1.msra.mxu0 0.0
        %548 = vmatprep.subr.mxu0 0.0
        %549 = vmatpush1.msra.mxu0 0.0
        %550 = vmatprep.subr.mxu0 0.0
        %551 = vmatpush1.msra.mxu0 0.0
        %552 = vmatprep.subr.mxu0 0.0
        %553 = vmatpush1.msra.mxu0 0.0
        %554 = vmatprep.subr.mxu0 0.0
        %555 = vmatpush1.msra.mxu0 0.0
        %556 = vmatprep.subr.mxu0 0.0
        %557 = vmatpush1.msra.mxu0 0.0
        %558 = vmatprep.subr.mxu0 0.0
        %559 = vmatpush1.msra.mxu0 0.0
        %560 = vmatprep.subr.mxu0 0.0
        %561 = vmatpush1.msra.mxu0 0.0
        %562 = vmatprep.subr.mxu0 0.0
        %563 = vmatpush1.msra.mxu0 0.0
        %564 = vmatprep.subr.mxu0 0.0
        %565 = vmatpush1.msra.mxu0 0.0
        %566 = vmatprep.subr.mxu0 0.0
        %567 = vmatpush1.msra.mxu0 0.0
        %568 = vmatprep.subr.mxu0 0.0
        %569 = vmatpush1.msra.mxu0 0.0
        %570 = vmatprep.subr.mxu0 0.0
        %571 = vmatpush1.msra.mxu0 0.0
        %572 = vmatprep.subr.mxu0 0.0
        %573 = vmatpush1.msra.mxu0 0.0
        %574 = vmatprep.subr.mxu0 0.0
        %575 = vmatpush1.msra.mxu0 0.0
        %576 = vmatprep.subr.mxu0 0.0
        %577 = vmatpush1.msra.mxu0 0.0
        %578 = vmatprep.subr.mxu0 0.0
        %579 = vmatpush1.msra.mxu0 0.0
        %580 = vmatprep.subr.mxu0 0.0
        %581 = vmatpush1.msra.mxu0 0.0
        %582 = vmatprep.mubr.f32.mxu0 0.0
        %583 = vmatmul.mubr.f32.gmra.mrb[0].mxu0 %v516
        %v584 = vpop.f32.mrb[0].mxu0
        %v585 = vadd.f32 %v508, %v584
        %v586 = vpop.f32.mrb[0].mxu0
        %587 = vdwg.mxu0
        %v588 = vld [vmem:[%s6] sm:$0x1]
        %v589 = vadd.f32 %v585, %v588
        %vm590 = vcmask 122880
        %591 = vst.msk [vmem:[%s283] sm:$0x1] %vm590, %v589
        %s592 = sand.u32 %s182, 1
        %s593 = scalar_lea.sflag [#allocation4], %s592
        %s594 = sand.u32 %s182, 1
        %s595 = scalar_lea.vmem [#allocation5], %s594
        // Predicated region
        $region53: #{tpu_custom_call.1} parent=47 // pred_check
          %p596 = pneg %p192
        $region54: #{tpu_custom_call.1} parent=47 // pred_check_branch
          %598 = sbr.rel (%p596) target = $region56
        $region55: #{tpu_custom_call.1} parent=47 // pred_region
          %s600 = ssub.s32 16, 16
          %601 = vsyncadd %s593, %s600
          %s602 = smul.addr %s22, 16
          %s603 = scalar_lea.hbm %s7, %s602
          %s605 = sshll.u32 %s595, 4
          %s606 = int_to_ptr.vmem [resolvable:$true] %s605
          %608 = dma.vmem_to_hbm [thread:$0]  %s606, 16, %s603, %s593
        $region56: #{tpu_custom_call.1} parent=47 // pred_fallthru
          _
      $region48: #{tpu_custom_call.1} parent=5 // pred_fallthru
        _
      %p609 = scmp.le.s32.totalorder 2, %s17
      // Predicated region
      $region57: #{tpu_custom_call.1} parent=5 // pred_check
        %p610 = pneg %p609
      $region58: #{tpu_custom_call.1} parent=5 // pred_check_branch
        %612 = sbr.rel (%p610) target = $region60
      $region59: #{tpu_custom_call.1} parent=5 // pred_region
        %s613 = ssub.s32 %s17, 2
        // Predicated region
        $region61: #{tpu_custom_call.1} parent=59 // pred_check
          %p614 = pneg %p198
        $region62: #{tpu_custom_call.1} parent=59 // pred_check_branch
          %616 = sbr.rel (%p614) target = $region64
        $region63: #{tpu_custom_call.1} parent=59 // pred_region
          %s617 = sand.u32 %s183, 1
          %s618 = scalar_lea.sflag [#allocation4], %s617
          %s619 = sand.u32 %s183, 1
          %s620 = scalar_lea.vmem [#allocation5], %s619
          %621 = dma.done %s618, 16
        $region64: #{tpu_custom_call.1} parent=59 // pred_fallthru
          _
      $region60: #{tpu_custom_call.1} parent=5 // pred_fallthru
        _
    $region6: #{tpu_custom_call.1} parent=1 // loop_footer
      %s21 = sadd.s32 1, %s17
    $region7: #{tpu_custom_call.1} parent=1 // loop_footer_branch
      %16 = sbr.rel target = $region3
    $region8: #{tpu_custom_call.1} parent=1 // loop_exit
      _
    %622 = vsyncpa [#allocation3], 1
    %s623 = scalar_lea.sflag [#allocation3], 1
    %624 = vsyncpa %s623, 1
    %625 = vsyncpa [#allocation4], 1
    %s626 = scalar_lea.sflag [#allocation4], 1
    %627 = vsyncpa %s626, 1

</llo_original>
